<compile_context>
chip_gen: v5e
topology: v5e:2x2
jax: 0.10.0
libtpu: 0.0.40
codegen_flags: <defaults>
</compile_context>

<pallas_src>
import jax
import jax.numpy as jnp
from jax.experimental import pallas as pl
from jax.experimental.pallas import tpu as pltpu


def _poly_abs_kernel(params_ref, t_ref, o_ref):
    # params_ref: SMEM (3,) -> a, b, c
    a = params_ref[0]
    b = params_ref[1]
    c = params_ref[2]
    t = t_ref[...]
    # Horner form: a + t*(b + c*t)  ==  a + b*t + c*t^2
    o_ref[...] = jnp.abs(a + t * (b + c * t))


def poisson_polynomial_tpp_forward(params, x, t):
    """params: (3,) f32 [a, b, c]; x: unused (matches the PyTorch module); t: any-shape float array."""
    del x  # forward ignores x, matching the reference module

    orig_shape = t.shape
    dtype = t.dtype

    flat = t.reshape(-1)
    n = flat.shape[0]

    LANES = 1024            # lane-dense width (multiple of 128) -> unmasked wide stores
    MAX_TILE_ROWS = 512     # 512 * 1024 * 4B = 2 MiB per f32 tile

    # Sublane granularity: 8 for 4-byte dtypes, 16 for 2-byte (e.g. bf16).
    sub = 16 if jnp.dtype(dtype).itemsize == 2 else 8

    rows = pl.cdiv(n, LANES)
    if rows <= MAX_TILE_ROWS:
        # Tiny / moderate input: one block, no grid-step overhead.
        tile_rows = max(sub, ((rows + sub - 1) // sub) * sub)
        grid_rows = 1
    else:
        tile_rows = MAX_TILE_ROWS
        grid_rows = pl.cdiv(rows, MAX_TILE_ROWS)

    padded_rows = grid_rows * tile_rows
    padded_n = padded_rows * LANES
    if padded_n != n:
        flat = jnp.pad(flat, (0, padded_n - n))
    t2d = flat.reshape(padded_rows, LANES)

    out2d = pl.pallas_call(
        _poly_abs_kernel,
        out_shape=jax.ShapeDtypeStruct((padded_rows, LANES), dtype),
        grid_spec=pltpu.PrefetchScalarGridSpec(
            num_scalar_prefetch=0,
            grid=(grid_rows,),
            in_specs=[
                pl.BlockSpec(memory_space=pltpu.SMEM),               # a, b, c scalars
                pl.BlockSpec((tile_rows, LANES), lambda i: (i, 0)),  # t tile
            ],
            out_specs=pl.BlockSpec((tile_rows, LANES), lambda i: (i, 0)),
        ),
        compiler_params=pltpu.CompilerParams(
            dimension_semantics=("parallel",),        # shards across v7x's 2 TCs
            vmem_limit_bytes=32 * 1024 * 1024,        # explicit headroom for large tiles
        ),
    )(params, t2d)

    return out2d.reshape(-1)[:n].reshape(orig_shape)


if __name__ == "__main__":
    key = jax.random.PRNGKey(0)
    k_a, k_b, k_c, k_x, k_t = jax.random.split(key, 5)

    # Deterministic "randn"-style scalar parameters a, b, c.
    a = jax.random.normal(k_a, (1,), dtype=jnp.float32)
    b = jax.random.normal(k_b, (1,), dtype=jnp.float32)
    c = jax.random.normal(k_c, (1,), dtype=jnp.float32)
    params = jnp.concatenate([a, b, c])  # (3,)

    # Small example inputs. x is present only to match the module signature.
    x = jax.random.normal(k_x, (16, 128), dtype=jnp.float32)
    t = jax.random.normal(k_t, (16, 128), dtype=jnp.float32)

    out = poisson_polynomial_tpp_forward(params, x, t)
    out = jax.block_until_ready(out)

    # Reference check in plain JAX.
    ref = jnp.abs(params[0] + params[1] * t + params[2] * t * t)
    assert out.shape == t.shape and out.dtype == t.dtype
    assert jnp.allclose(out, ref, atol=1e-6, rtol=1e-6)

    # Also exercise a larger, non-divisible shape to hit the tiled path.
    t_big = jax.random.normal(k_t, (1000, 777), dtype=jnp.float32)
    out_big = jax.block_until_ready(poisson_polynomial_tpp_forward(params, None, t_big))
    ref_big = jnp.abs(params[0] + params[1] * t_big + params[2] * t_big * t_big)
    assert out_big.shape == t_big.shape
    assert jnp.allclose(out_big, ref_big, atol=1e-6, rtol=1e-6)

    print("KERNEL_OK")
</pallas_src>

<mosaic_0001>
module attributes {stable_mosaic.version = 11 : i64} {
  func.func @_poly_abs_kernel(%arg0: i32, %arg1: memref<3xf32, #tpu.memory_space<smem>>, %arg2: memref<8x1024xf32, #tpu.memory_space<vmem>>, %arg3: memref<8x1024xf32, #tpu.memory_space<vmem>>) attributes {dimension_semantics = [#tpu.dimension_semantics<parallel>], iteration_bounds = array<i64: 1>, scalar_prefetch = 0 : i64, scratch_operands = 0 : i64, tpu.core_type = #tpu.core_type<tc>, window_params = [{transform_indices = @transform_0, window_bounds = array<i64: 3>}, {transform_indices = @transform_1, window_bounds = array<i64: 8, 1024>}, {transform_indices = @transform_2, window_bounds = array<i64: 8, 1024>}]} {
    %c0 = arith.constant 0 : index
    %0 = memref.load %arg1[%c0] : memref<3xf32, #tpu.memory_space<smem>>
    %c1 = arith.constant 1 : index
    %1 = memref.load %arg1[%c1] : memref<3xf32, #tpu.memory_space<smem>>
    %c2 = arith.constant 2 : index
    %2 = memref.load %arg1[%c2] : memref<3xf32, #tpu.memory_space<smem>>
    %c0_0 = arith.constant 0 : index
    %c0_1 = arith.constant 0 : index
    %3 = vector.load %arg2[%c0_0, %c0_1] : memref<8x1024xf32, #tpu.memory_space<vmem>>, vector<8x1024xf32>
    %4 = vector.broadcast %2 : f32 to vector<8x1024xf32>
    %5 = arith.mulf %4, %3 : vector<8x1024xf32>
    %6 = vector.broadcast %1 : f32 to vector<8x1024xf32>
    %7 = arith.addf %6, %5 : vector<8x1024xf32>
    %8 = arith.mulf %3, %7 : vector<8x1024xf32>
    %9 = vector.broadcast %0 : f32 to vector<8x1024xf32>
    %10 = arith.addf %9, %8 : vector<8x1024xf32>
    %11 = math.absf %10 : vector<8x1024xf32>
    %c0_2 = arith.constant 0 : index
    %c0_3 = arith.constant 0 : index
    %12 = vector.load %arg3[%c0_2, %c0_3] : memref<8x1024xf32, #tpu.memory_space<vmem>>, vector<8x1024xf32>
    tpu.vector_store %arg3[%c0_2, %c0_3], %11 {strides = array<i32>} : memref<8x1024xf32, #tpu.memory_space<vmem>>, vector<8x1024xf32>,
    return
  }
  func.func @transform_0(%arg0: i32) -> i32 {
    %c0_i32 = arith.constant 0 : i32
    %c0_i32_0 = arith.constant 0 : i32
    return %c0_i32 : i32
  }
  func.func @transform_1(%arg0: i32) -> (i32, i32) {
    %c0_i32 = arith.constant 0 : i32
    %c0_i32_0 = arith.constant 0 : i32
    return %arg0, %c0_i32 : i32, i32
  }
  func.func @transform_2(%arg0: i32) -> (i32, i32) {
    %c0_i32 = arith.constant 0 : i32
    %c0_i32_0 = arith.constant 0 : i32
    return %arg0, %c0_i32 : i32, i32
  }
}

</mosaic_0001>

<llo_original>
// kernel: tpu_custom_call.1
$region0: #{tpu_custom_call.1}
  #allocation0 [shape = 'u32[]', space=smem, size = 0x4, offset = 0x4, fixed_abs, tag = 'smem constant byte address 0x4 - core index']
  #allocation1 [shape = 'u32[72,128]{1,0:T(1,128)}', space=vmem, size = 0x9000, scoped, tag = 'internal scratch']
  %s0 = inlined_call_operand.hbm [shape: f32[3], index: 0, kind: input, shape index: {}]
  %s1 = inlined_call_operand.hbm [shape: f32[8,1024], index: 1, kind: input, shape index: {}]
  %s2 = inlined_call_operand.hbm [shape: f32[8,1024], index: 2, kind: output, shape index: {}]
  %s3 = sld [smem:[#allocation0]]
  $region26: #{tpu_custom_call.1} parent=0
    _
  %s5 = ssub.s32 1, %s3
  %s6 = scalar_select 0, %s5, %s3
  $region1: #{tpu_custom_call.1} parent=0
    #allocation2 [shape = 'u8[512]{0}', space=smem, size = 0x200, scoped, tag = 'input window, operand 0, single buffered']
    #allocation3 [shape = 's32[1]{0}', space=sflag, size = 0x4, scoped, tag = 'scoped memory for tpu_custom_call.1']
    #allocation4 [shape = 's32[1]{0}', space=sflag, size = 0x4, scoped, tag = 'scoped memory for tpu_custom_call.1']
    #allocation5 [shape = 's32[1]{0}', space=sflag, size = 0x4, scoped, tag = 'scoped memory for tpu_custom_call.1']
    #allocation6 [shape = 'u8[32768]{0}', space=vmem, size = 0x8000, scoped, tag = 'input window, operand 1, single buffered']
    #allocation7 [shape = 'u8[32768]{0}', space=vmem, size = 0x8000, scoped, tag = 'output window, operand 0, single buffered']
    %7 = vsyncpa [#allocation5], 0
    %8 = vsyncpa [#allocation3], 0
    %9 = vsyncpa [#allocation4], 0
    // Predicated region
    $region2: #{tpu_custom_call.1} parent=1 // pred_check
      _
    $region3: #{tpu_custom_call.1} parent=1 // pred_check_branch
      %11 = sbr.rel (0) target = $region5
    $region4: #{tpu_custom_call.1} parent=1 // pred_region
      %13 = vsyncadd [#allocation5], 0
      %s15 = sshll.u32 %s0, 4
      %s16 = int_to_ptr.hbm [resolvable:$true] %s15
      %18 = dma.hbm_to_smem %s16, 16, [#allocation2], [#allocation5]
    $region5: #{tpu_custom_call.1} parent=1 // pred_fallthru
      _
    // Predicated region
    $region6: #{tpu_custom_call.1} parent=1 // pred_check
      _
    $region7: #{tpu_custom_call.1} parent=1 // pred_check_branch
      %20 = sbr.rel (0) target = $region9
    $region8: #{tpu_custom_call.1} parent=1 // pred_region
      %22 = vsyncadd [#allocation3], 0
      %s24 = sshll.u32 %s1, 4
      %s25 = int_to_ptr.hbm [resolvable:$true] %s24
      %s26 = sshll.u32 [#allocation6], 4
      %s27 = int_to_ptr.vmem [resolvable:$true] %s26
      %29 = dma.hbm_to_vmem [thread:$0]  %s25, 1024, %s27, [#allocation3]
    $region9: #{tpu_custom_call.1} parent=1 // pred_fallthru
      _
    // Predicated region
    $region10: #{tpu_custom_call.1} parent=1 // pred_check
      _
    $region11: #{tpu_custom_call.1} parent=1 // pred_check_branch
      %31 = sbr.rel (0) target = $region13
    $region12: #{tpu_custom_call.1} parent=1 // pred_region
      %33 = dma.done [#allocation5], 16
    $region13: #{tpu_custom_call.1} parent=1 // pred_fallthru
      _
    // Predicated region
    $region14: #{tpu_custom_call.1} parent=1 // pred_check
      _
    $region15: #{tpu_custom_call.1} parent=1 // pred_check_branch
      %35 = sbr.rel (0) target = $region17
    $region16: #{tpu_custom_call.1} parent=1 // pred_region
      %37 = dma.done [#allocation3], 1024
    $region17: #{tpu_custom_call.1} parent=1 // pred_fallthru
      _
    %38 = sfence
    %s39 = sld [smem:[#allocation2]]
    %s40 = sld [smem:[#allocation2 + $0x1]]
    %s41 = sld [smem:[#allocation2 + $0x2]]
    %v42 = vld [vmem:[#allocation6] sm:$0xff]
    %v43 = vld [vmem:[#allocation6 + $0x8] sm:$0xff]
    %v44 = vld [vmem:[#allocation6 + $0x10] sm:$0xff]
    %v45 = vld [vmem:[#allocation6 + $0x18] sm:$0xff]
    %v46 = vld [vmem:[#allocation6 + $0x20] sm:$0xff]
    %v47 = vld [vmem:[#allocation6 + $0x28] sm:$0xff]
    %v48 = vld [vmem:[#allocation6 + $0x30] sm:$0xff]
    %v49 = vld [vmem:[#allocation6 + $0x38] sm:$0xff]
    %v50 = vstv %s41
    %v51 = vmul.f32 %v50, %v42
    %v52 = vmul.f32 %v50, %v43
    %v53 = vmul.f32 %v50, %v44
    %v54 = vmul.f32 %v50, %v45
    %v55 = vmul.f32 %v50, %v46
    %v56 = vmul.f32 %v50, %v47
    %v57 = vmul.f32 %v50, %v48
    %v58 = vmul.f32 %v50, %v49
    %v59 = vstv %s40
    %v60 = vadd.f32 %v59, %v51
    %v61 = vadd.f32 %v59, %v52
    %v62 = vadd.f32 %v59, %v53
    %v63 = vadd.f32 %v59, %v54
    %v64 = vadd.f32 %v59, %v55
    %v65 = vadd.f32 %v59, %v56
    %v66 = vadd.f32 %v59, %v57
    %v67 = vadd.f32 %v59, %v58
    %v68 = vmul.f32 %v42, %v60
    %v69 = vmul.f32 %v43, %v61
    %v70 = vmul.f32 %v44, %v62
    %v71 = vmul.f32 %v45, %v63
    %v72 = vmul.f32 %v46, %v64
    %v73 = vmul.f32 %v47, %v65
    %v74 = vmul.f32 %v48, %v66
    %v75 = vmul.f32 %v49, %v67
    %v76 = vstv %s39
    %v77 = vadd.f32 %v76, %v68
    %v78 = vadd.f32 %v76, %v69
    %v79 = vadd.f32 %v76, %v70
    %v80 = vadd.f32 %v76, %v71
    %v81 = vadd.f32 %v76, %v72
    %v82 = vadd.f32 %v76, %v73
    %v83 = vadd.f32 %v76, %v74
    %v84 = vadd.f32 %v76, %v75
    %v85 = vand.u32 2147483647, %v77
    %v86 = vand.u32 2147483647, %v78
    %v87 = vand.u32 2147483647, %v79
    %v88 = vand.u32 2147483647, %v80
    %v89 = vand.u32 2147483647, %v81
    %v90 = vand.u32 2147483647, %v82
    %v91 = vand.u32 2147483647, %v83
    %v92 = vand.u32 2147483647, %v84
    %93 = vst [vmem:[#allocation7] sm:$0xff] %v85
    %94 = vst [vmem:[#allocation7 + $0x8] sm:$0xff] %v86
    %95 = vst [vmem:[#allocation7 + $0x10] sm:$0xff] %v87
    %96 = vst [vmem:[#allocation7 + $0x18] sm:$0xff] %v88
    %97 = vst [vmem:[#allocation7 + $0x20] sm:$0xff] %v89
    %98 = vst [vmem:[#allocation7 + $0x28] sm:$0xff] %v90
    %99 = vst [vmem:[#allocation7 + $0x30] sm:$0xff] %v91
    %100 = vst [vmem:[#allocation7 + $0x38] sm:$0xff] %v92
    // Predicated region
    $region18: #{tpu_custom_call.1} parent=1 // pred_check
      _
    $region19: #{tpu_custom_call.1} parent=1 // pred_check_branch
      %102 = sbr.rel (0) target = $region21
    $region20: #{tpu_custom_call.1} parent=1 // pred_region
      %104 = vsyncadd [#allocation4], 0
      %s106 = sshll.u32 [#allocation7], 4
      %s107 = int_to_ptr.vmem [resolvable:$true] %s106
      %s108 = sshll.u32 %s2, 4
      %s109 = int_to_ptr.hbm [resolvable:$true] %s108
      %111 = dma.vmem_to_hbm [thread:$0]  %s107, 1024, %s109, [#allocation4]
    $region21: #{tpu_custom_call.1} parent=1 // pred_fallthru
      _
    // Predicated region
    $region22: #{tpu_custom_call.1} parent=1 // pred_check
      _
    $region23: #{tpu_custom_call.1} parent=1 // pred_check_branch
      %113 = sbr.rel (0) target = $region25
    $region24: #{tpu_custom_call.1} parent=1 // pred_region
      %115 = dma.done [#allocation4], 1024
    $region25: #{tpu_custom_call.1} parent=1 // pred_fallthru
      _
    %116 = vsyncpa [#allocation3], 1
    %117 = vsyncpa [#allocation4], 1
    %118 = vsyncpa [#allocation5], 1

</llo_original>
